<compile_context>
chip_gen: v7x
topology: tpu7x:2x2x1
jax: 0.10.0
libtpu: 0.0.40
codegen_flags: <defaults>
</compile_context>

<pallas_src>
import functools

import jax
import jax.numpy as jnp
from jax.experimental import pallas as pl
from jax.experimental.pallas import tpu as pltpu

_EPS = 1e-10
_MAX_TILE_BYTES = 2 * 1024 * 1024  # f32 tile cap; 2x-buffered in+out stays < 16 MiB


# ---------------------------------------------------------------------------
# Pass 1: streaming sum / sum-of-squares -> folded scalar scale & shift (SMEM)
# ---------------------------------------------------------------------------
def _stats_kernel(gamma_ref, beta_ref, x_ref, stats_ref, sum_acc, sq_acc, *, n_total):
    tr, lanes = x_ref.shape  # static tile shape
    t = pl.program_id(0)

    @pl.when(t == 0)
    def _init():
        sum_acc[...] = jnp.zeros_like(sum_acc)
        sq_acc[...] = jnp.zeros_like(sq_acc)

    x = x_ref[...].astype(jnp.float32)
    if tr % 8 == 0:
        # Layout-preserving reshape (sublane dim split at a multiple of 8);
        # the axis-0 reduce is a chain of vreg-wise VPU adds, not an XLU reduce.
        xr = x.reshape(tr // 8, 8, lanes)
        sum_acc[...] += jnp.sum(xr, axis=0)
        sq_acc[...] += jnp.sum(xr * xr, axis=0)
    else:
        # Irregular tiny tile (rows not a multiple of 8, single-tile fallback):
        # direct reduce deposited into sublane row 0 of the accumulator.
        row = jax.lax.broadcasted_iota(jnp.int32, (8, lanes), 0)
        ps = jnp.sum(x, axis=0, keepdims=True)
        qs = jnp.sum(x * x, axis=0, keepdims=True)
        sum_acc[...] += jnp.where(row == 0, ps, 0.0)
        sq_acc[...] += jnp.where(row == 0, qs, 0.0)

    @pl.when(t == pl.num_programs(0) - 1)
    def _finalize():
        n = jnp.float32(n_total)
        total_sum = jnp.sum(sum_acc[...])   # single (8, lanes) XLU collapse
        total_sq = jnp.sum(sq_acc[...])
        mean = total_sum / n
        # One-pass unbiased variance (matches torch.var correction=1).
        # NOTE: sumsq - n*mean^2 can lose precision if |mean| >> std; fine for
        # activation statistics, and guarded against going negative.
        var = jnp.maximum(
            (total_sq - n * mean * mean) / jnp.float32(n_total - 1), 0.0)
        inv_std = jax.lax.rsqrt(var + jnp.float32(_EPS))
        scale = gamma_ref[0] * inv_std
        shift = beta_ref[0] - mean * scale
        stats_ref[0] = scale
        stats_ref[1] = shift


# ---------------------------------------------------------------------------
# Pass 2: elementwise normalize, affine folded into two scalars
# ---------------------------------------------------------------------------
def _normalize_kernel(stats_ref, x_ref, o_ref):
    scale = stats_ref[0]
    shift = stats_ref[1]
    o_ref[...] = (x_ref[...].astype(jnp.float32) * scale + shift).astype(o_ref.dtype)


# ---------------------------------------------------------------------------
# Wrapper
# ---------------------------------------------------------------------------
def _factorize(total):
    """Lane-dense 2-D factorization: widest lane dim keeping rows % 8 == 0."""
    for lanes in (1024, 512, 256, 128):
        if total % lanes == 0 and (total // lanes) % 8 == 0:
            return total // lanes, lanes
    for lanes in (1024, 512, 256, 128):
        if total % lanes == 0:
            return total // lanes, lanes
    raise ValueError("total element count must be a multiple of 128")


def _choose_tile_rows(rows, lanes):
    """Largest row-tile (multiple of 8, dividing rows) within the byte cap."""
    max_rows = max(8, _MAX_TILE_BYTES // (4 * lanes))
    if rows <= max_rows:
        return rows
    t = (max_rows // 8) * 8
    while t >= 8:
        if rows % t == 0:
            return t
        t -= 8
    return rows  # fallback: single (full-array) block


def bn1d_ref(x, gamma, beta):
    """Pallas implementation of BN1dRef.forward."""
    orig_shape = x.shape
    orig_dtype = x.dtype
    total = x.size
    assert total > 1, "unbiased variance needs at least 2 elements"
    assert total % 128 == 0, "total element count must be a multiple of 128"

    rows, lanes = _factorize(total)
    tile_rows = _choose_tile_rows(rows, lanes)
    num_tiles = rows // tile_rows
    x2d = x.reshape(rows, lanes)

    gamma_arr = jnp.asarray(gamma, jnp.float32).reshape(1)
    beta_arr = jnp.asarray(beta, jnp.float32).reshape(1)

    # Pass 1: scalar stats [scale, shift] in SMEM.
    stats = pl.pallas_call(
        functools.partial(_stats_kernel, n_total=total),
        out_shape=jax.ShapeDtypeStruct((2,), jnp.float32),
        grid=(num_tiles,),
        in_specs=[
            pl.BlockSpec(memory_space=pltpu.SMEM),                # gamma
            pl.BlockSpec(memory_space=pltpu.SMEM),                # beta
            pl.BlockSpec((tile_rows, lanes), lambda t: (t, 0)),   # x tile
        ],
        out_specs=pl.BlockSpec(memory_space=pltpu.SMEM),          # [scale, shift]
        scratch_shapes=[
            pltpu.VMEM((8, lanes), jnp.float32),   # running sum partials
            pltpu.VMEM((8, lanes), jnp.float32),   # running sum-of-squares
        ],
        compiler_params=pltpu.CompilerParams(
            dimension_semantics=("arbitrary",)),
    )(gamma_arr, beta_arr, x2d)

    # Pass 2: pipelined elementwise normalize (megacore-parallel tile axis).
    out2d = pl.pallas_call(
        _normalize_kernel,
        out_shape=jax.ShapeDtypeStruct((rows, lanes), orig_dtype),
        grid=(num_tiles,),
        in_specs=[
            pl.BlockSpec(memory_space=pltpu.SMEM),                # [scale, shift]
            pl.BlockSpec((tile_rows, lanes), lambda t: (t, 0)),   # x tile
        ],
        out_specs=pl.BlockSpec((tile_rows, lanes), lambda t: (t, 0)),
        compiler_params=pltpu.CompilerParams(
            dimension_semantics=("parallel",)),
    )(stats, x2d)

    return out2d.reshape(orig_shape)


def bn1d_reference_jax(x, gamma, beta):
    """Pure-JAX reference mirroring the PyTorch module (for verification)."""
    xf = x.reshape(-1).astype(jnp.float32)
    mean = jnp.mean(xf)
    var = jnp.sum((xf - mean) ** 2) / jnp.float32(xf.size - 1)  # unbiased
    return (gamma * (x - mean) / jnp.sqrt(var + _EPS) + beta).astype(x.dtype)


if __name__ == "__main__":
    key = jax.random.PRNGKey(0)
    # Small NCHW-ish input consistent with an MNIST-style conv activation.
    x = jax.random.normal(key, (2, 4, 16, 16), dtype=jnp.float32)

    # Parameters as in the module's __init__ (gamma=1, beta=0).
    gamma = jnp.float32(1.0)
    beta = jnp.float32(0.0)

    out = bn1d_ref(x, gamma, beta)
    out = jax.block_until_ready(out)
    ref = bn1d_reference_jax(x, gamma, beta)
    assert out.shape == x.shape and out.dtype == x.dtype
    assert jnp.allclose(out, ref, atol=1e-5, rtol=1e-5)

    # Also exercise the folded affine path with non-default parameters.
    g2, b2 = jnp.float32(1.5), jnp.float32(-0.25)
    out2 = jax.block_until_ready(bn1d_ref(x, g2, b2))
    ref2 = bn1d_reference_jax(x, g2, b2)
    assert jnp.allclose(out2, ref2, atol=1e-5, rtol=1e-5)

    print("KERNEL_OK")
</pallas_src>

<mosaic_0001>
module attributes {stable_mosaic.version = 11 : i64} {
  func.func @_stats_kernel(%arg0: i32, %arg1: memref<1xf32, #tpu.memory_space<smem>>, %arg2: memref<1xf32, #tpu.memory_space<smem>>, %arg3: memref<8x256xf32, #tpu.memory_space<vmem>>, %arg4: memref<2xf32, #tpu.memory_space<smem>>, %arg5: memref<8x256xf32, #tpu.memory_space<vmem>>, %arg6: memref<8x256xf32, #tpu.memory_space<vmem>>) attributes {dimension_semantics = [#tpu.dimension_semantics<arbitrary>], iteration_bounds = array<i64: 1>, scalar_prefetch = 0 : i64, scratch_operands = 2 : i64, tpu.core_type = #tpu.core_type<tc>, window_params = [{transform_indices = @transform_0, window_bounds = array<i64: 1>}, {transform_indices = @transform_1, window_bounds = array<i64: 1>}, {transform_indices = @transform_2, window_bounds = array<i64: 8, 256>}, {transform_indices = @transform_3, window_bounds = array<i64: 2>}]} {
    %c0_i32 = arith.constant 0 : i32
    %0 = arith.cmpi eq, %arg0, %c0_i32 : i32
    %1 = arith.extui %0 : i1 to i32
    %c0_i32_0 = arith.constant 0 : i32
    %2 = arith.cmpi ne, %1, %c0_i32_0 : i32
    scf.if %2 {
      %cst_13 = arith.constant 0.000000e+00 : f32
      %17 = vector.broadcast %cst_13 : f32 to vector<8x256xf32>
      %c0_14 = arith.constant 0 : index
      %c0_15 = arith.constant 0 : index
      %18 = vector.load %arg5[%c0_14, %c0_15] : memref<8x256xf32, #tpu.memory_space<vmem>>, vector<8x256xf32>
      tpu.vector_store %arg5[%c0_14, %c0_15], %17 {strides = array<i32>} : memref<8x256xf32, #tpu.memory_space<vmem>>, vector<8x256xf32>,
      %cst_16 = arith.constant 0.000000e+00 : f32
      %19 = vector.broadcast %cst_16 : f32 to vector<8x256xf32>
      %c0_17 = arith.constant 0 : index
      %c0_18 = arith.constant 0 : index
      %20 = vector.load %arg6[%c0_17, %c0_18] : memref<8x256xf32, #tpu.memory_space<vmem>>, vector<8x256xf32>
      tpu.vector_store %arg6[%c0_17, %c0_18], %19 {strides = array<i32>} : memref<8x256xf32, #tpu.memory_space<vmem>>, vector<8x256xf32>,
    } else {
    }
    %c0 = arith.constant 0 : index
    %c0_1 = arith.constant 0 : index
    %3 = vector.load %arg3[%c0, %c0_1] : memref<8x256xf32, #tpu.memory_space<vmem>>, vector<8x256xf32>
    %4 = vector.shape_cast %3 : vector<8x256xf32> to vector<1x8x256xf32>
    %c0_2 = arith.constant 0 : index
    %c0_3 = arith.constant 0 : index
    %5 = vector.load %arg5[%c0_2, %c0_3] : memref<8x256xf32, #tpu.memory_space<vmem>>, vector<8x256xf32>
    %cst = arith.constant dense<0.000000e+00> : vector<8x256xf32>
    %6 = vector.multi_reduction <add>, %4, %cst [0] : vector<1x8x256xf32> to vector<8x256xf32>
    %7 = arith.addf %5, %6 : vector<8x256xf32>
    %c0_4 = arith.constant 0 : index
    %c0_5 = arith.constant 0 : index
    %8 = vector.load %arg5[%c0_4, %c0_5] : memref<8x256xf32, #tpu.memory_space<vmem>>, vector<8x256xf32>
    tpu.vector_store %arg5[%c0_4, %c0_5], %7 {strides = array<i32>} : memref<8x256xf32, #tpu.memory_space<vmem>>, vector<8x256xf32>,
    %c0_6 = arith.constant 0 : index
    %c0_7 = arith.constant 0 : index
    %9 = vector.load %arg6[%c0_6, %c0_7] : memref<8x256xf32, #tpu.memory_space<vmem>>, vector<8x256xf32>
    %10 = arith.mulf %4, %4 : vector<1x8x256xf32>
    %cst_8 = arith.constant dense<0.000000e+00> : vector<8x256xf32>
    %11 = vector.multi_reduction <add>, %10, %cst_8 [0] : vector<1x8x256xf32> to vector<8x256xf32>
    %12 = arith.addf %9, %11 : vector<8x256xf32>
    %c0_9 = arith.constant 0 : index
    %c0_10 = arith.constant 0 : index
    %13 = vector.load %arg6[%c0_9, %c0_10] : memref<8x256xf32, #tpu.memory_space<vmem>>, vector<8x256xf32>
    tpu.vector_store %arg6[%c0_9, %c0_10], %12 {strides = array<i32>} : memref<8x256xf32, #tpu.memory_space<vmem>>, vector<8x256xf32>,
    %c0_i32_11 = arith.constant 0 : i32
    %14 = arith.cmpi eq, %arg0, %c0_i32_11 : i32
    %15 = arith.extui %14 : i1 to i32
    %c0_i32_12 = arith.constant 0 : i32
    %16 = arith.cmpi ne, %15, %c0_i32_12 : i32
    scf.if %16 {
      %c0_13 = arith.constant 0 : index
      %c0_14 = arith.constant 0 : index
      %17 = vector.load %arg5[%c0_13, %c0_14] : memref<8x256xf32, #tpu.memory_space<vmem>>, vector<8x256xf32>
      %18 = vector.shape_cast %17 : vector<8x256xf32> to vector<1x8x256xf32>
      %cst_15 = arith.constant dense<0.000000e+00> : vector<1xf32>
      %19 = vector.multi_reduction <add>, %18, %cst_15 [1, 2] : vector<1x8x256xf32> to vector<1xf32>
      %20 = vector.shape_cast %19 : vector<1xf32> to vector<1x1x1xf32>
      %21 = vector.extract %20[0, 0, 0] : f32 from vector<1x1x1xf32>
      %c0_16 = arith.constant 0 : index
      %c0_17 = arith.constant 0 : index
      %22 = vector.load %arg6[%c0_16, %c0_17] : memref<8x256xf32, #tpu.memory_space<vmem>>, vector<8x256xf32>
      %23 = vector.shape_cast %22 : vector<8x256xf32> to vector<1x8x256xf32>
      %cst_18 = arith.constant dense<0.000000e+00> : vector<1xf32>
      %24 = vector.multi_reduction <add>, %23, %cst_18 [1, 2] : vector<1x8x256xf32> to vector<1xf32>
      %25 = vector.shape_cast %24 : vector<1xf32> to vector<1x1x1xf32>
      %26 = vector.extract %25[0, 0, 0] : f32 from vector<1x1x1xf32>
      %cst_19 = arith.constant 2.048000e+03 : f32
      %27 = arith.divf %21, %cst_19 : f32
      %cst_20 = arith.constant 2.048000e+03 : f32
      %28 = arith.mulf %cst_20, %27 : f32
      %29 = arith.mulf %28, %27 : f32
      %30 = arith.subf %26, %29 : f32
      %cst_21 = arith.constant 2.047000e+03 : f32
      %31 = arith.divf %30, %cst_21 : f32
      %cst_22 = arith.constant 0.000000e+00 : f32
      %32 = arith.maximumf %31, %cst_22 : f32
      %cst_23 = arith.constant 1.000000e-10 : f32
      %33 = arith.addf %32, %cst_23 : f32
      %34 = math.rsqrt %33 : f32
      %c0_24 = arith.constant 0 : index
      %35 = memref.load %arg1[%c0_24] : memref<1xf32, #tpu.memory_space<smem>>
      %36 = arith.mulf %35, %34 : f32
      %c0_25 = arith.constant 0 : index
      %37 = memref.load %arg2[%c0_25] : memref<1xf32, #tpu.memory_space<smem>>
      %38 = arith.mulf %27, %36 : f32
      %39 = arith.subf %37, %38 : f32
      %c0_26 = arith.constant 0 : index
      %40 = memref.load %arg4[%c0_26] : memref<2xf32, #tpu.memory_space<smem>>
      memref.store %36, %arg4[%c0_26] : memref<2xf32, #tpu.memory_space<smem>>
      %c1 = arith.constant 1 : index
      %41 = memref.load %arg4[%c1] : memref<2xf32, #tpu.memory_space<smem>>
      memref.store %39, %arg4[%c1] : memref<2xf32, #tpu.memory_space<smem>>
    } else {
    }
    return
  }
  func.func @transform_0(%arg0: i32) -> i32 {
    %c0_i32 = arith.constant 0 : i32
    %c0_i32_0 = arith.constant 0 : i32
    return %c0_i32 : i32
  }
  func.func @transform_1(%arg0: i32) -> i32 {
    %c0_i32 = arith.constant 0 : i32
    %c0_i32_0 = arith.constant 0 : i32
    return %c0_i32 : i32
  }
  func.func @transform_2(%arg0: i32) -> (i32, i32) {
    %c0_i32 = arith.constant 0 : i32
    %c0_i32_0 = arith.constant 0 : i32
    return %arg0, %c0_i32 : i32, i32
  }
  func.func @transform_3(%arg0: i32) -> i32 {
    %c0_i32 = arith.constant 0 : i32
    %c0_i32_0 = arith.constant 0 : i32
    return %c0_i32 : i32
  }
}

</mosaic_0001>

<llo_original>
// kernel: tpu_custom_call.1
$region0: #{tpu_custom_call.1}
  #allocation0 [shape = 'u32[]', space=smem, size = 0x4, offset = 0x4, fixed_abs, tag = 'smem constant byte address 0x4 - core index']
  #allocation1 [shape = 'u32[144,128]{1,0:T(1,128)}', space=vmem, size = 0x12000, scoped, tag = 'internal scratch']
  #allocation2 [shape = 'f32[8,256]{1,0:T(8,128)}', space=vmem, size = 0x2000, scoped, tag = 'scratch operand']
  #allocation3 [shape = 'f32[8,256]{1,0:T(8,128)}', space=vmem, size = 0x2000, scoped, tag = 'scratch operand']
  #allocation4 [shape = 'f32[1]{0:T(128)S(6)}', space=smem, size = 0x200, scoped, tag = 'scoped memory for tpu_custom_call.1']
  #allocation5 [shape = 'f32[1]{0:T(128)S(6)}', space=smem, size = 0x200, scoped, tag = 'scoped memory for tpu_custom_call.1']
  %s0 = inlined_call_operand.<no memory space> [shape: f32[1], index: 0, kind: input, shape index: {}]
  %s1 = inlined_call_operand.<no memory space> [shape: f32[1], index: 1, kind: input, shape index: {}]
  %s2 = inlined_call_operand.hbm [shape: f32[8,256], index: 2, kind: input, shape index: {}]
  %s3 = inlined_call_operand.hbm [shape: f32[2], index: 3, kind: output, shape index: {}]
  %s4 = sld [smem:[#allocation0]]
  $region34: #{tpu_custom_call.1} parent=0
    _
  %s6 = ssub.s32 1, %s4
  %s7 = scalar_select 0, %s6, %s4
  %8 = sst [smem:[#allocation4]] %s0
  %9 = sst [smem:[#allocation5]] %s1
  $region1: #{tpu_custom_call.1} parent=0
    #allocation6 [shape = 'u8[8192]{0}', space=vmem, size = 0x2000, scoped, tag = 'input window, operand 2, single buffered']
    #allocation7 [shape = 's32[1]{0}', space=sflag, size = 0x4, scoped, tag = 'scoped memory for tpu_custom_call.1']
    #allocation8 [shape = 's32[1]{0}', space=sflag, size = 0x4, scoped, tag = 'scoped memory for tpu_custom_call.1']
    #allocation9 [shape = 'u8[512]{0}', space=smem, size = 0x200, scoped, tag = 'output window, operand 0, single buffered']
    %10 = vsyncpa [#allocation7], 0
    %11 = vsyncpa [#allocation8], 0
    // Predicated region
    $region2: #{tpu_custom_call.1} parent=1 // pred_check
      _
    $region3: #{tpu_custom_call.1} parent=1 // pred_check_branch
      %13 = sbr.rel (0) target = $region5
    $region4: #{tpu_custom_call.1} parent=1 // pred_region
      _
    $region5: #{tpu_custom_call.1} parent=1 // pred_fallthru
      _
    // Predicated region
    $region6: #{tpu_custom_call.1} parent=1 // pred_check
      _
    $region7: #{tpu_custom_call.1} parent=1 // pred_check_branch
      %15 = sbr.rel (0) target = $region9
    $region8: #{tpu_custom_call.1} parent=1 // pred_region
      _
    $region9: #{tpu_custom_call.1} parent=1 // pred_fallthru
      _
    // Predicated region
    $region10: #{tpu_custom_call.1} parent=1 // pred_check
      _
    $region11: #{tpu_custom_call.1} parent=1 // pred_check_branch
      %17 = sbr.rel (0) target = $region13
    $region12: #{tpu_custom_call.1} parent=1 // pred_region
      %s19 = ssub.s32 256, 256
      %20 = vsyncadd [#allocation7], %s19
      %s22 = sshll.u32 [#allocation6], 4
      %s23 = int_to_ptr.vmem [resolvable:$true] %s22
      %25 = dma.hbm_to_vmem [thread:$0]  %s2, 256, %s23, [#allocation7]
    $region13: #{tpu_custom_call.1} parent=1 // pred_fallthru
      _
    // Predicated region
    $region14: #{tpu_custom_call.1} parent=1 // pred_check
      _
    $region15: #{tpu_custom_call.1} parent=1 // pred_check_branch
      %27 = sbr.rel (0) target = $region17
    $region16: #{tpu_custom_call.1} parent=1 // pred_region
      %28 = dma.done [#allocation7], 256
    $region17: #{tpu_custom_call.1} parent=1 // pred_fallthru
      _
    %p29 = scmp.eq.s32.totalorder 0, 0
    // Predicated region
    $region18: #{tpu_custom_call.1} parent=1 // pred_check
      %p30 = pneg %p29
    $region19: #{tpu_custom_call.1} parent=1 // pred_check_branch
      %32 = sbr.rel (%p30) target = $region21
    $region20: #{tpu_custom_call.1} parent=1 // pred_region
      %33 = vst [vmem:[#allocation2] sm:$0xff] 0.0
      %34 = vst [vmem:[#allocation2 + $0x8] sm:$0xff] 0.0
      %35 = vst [vmem:[#allocation3] sm:$0xff] 0.0
      %36 = vst [vmem:[#allocation3 + $0x8] sm:$0xff] 0.0
    $region21: #{tpu_custom_call.1} parent=1 // pred_fallthru
      _
    %v37 = vld [vmem:[#allocation6] sm:$0xff]
    %v38 = vld [vmem:[#allocation6 + $0x8] sm:$0xff]
    %v39 = vld [vmem:[#allocation2] sm:$0xff]
    %v40 = vld [vmem:[#allocation2 + $0x8] sm:$0xff]
    %v41 = vadd.f32 %v37, 0.0
    %v42 = vadd.f32 %v38, 0.0
    %v43 = vadd.f32 %v39, %v41
    %v44 = vadd.f32 %v40, %v42
    %45 = vst [vmem:[#allocation2] sm:$0xff] %v43
    %46 = vst [vmem:[#allocation2 + $0x8] sm:$0xff] %v44
    %v47 = vld [vmem:[#allocation3] sm:$0xff]
    %v48 = vld [vmem:[#allocation3 + $0x8] sm:$0xff]
    %v49 = vmul.f32 %v37, %v37
    %v50 = vmul.f32 %v38, %v38
    %v51 = vadd.f32 %v49, 0.0
    %v52 = vadd.f32 %v50, 0.0
    %v53 = vadd.f32 %v47, %v51
    %v54 = vadd.f32 %v48, %v52
    %55 = vst [vmem:[#allocation3] sm:$0xff] %v53
    %56 = vst [vmem:[#allocation3 + $0x8] sm:$0xff] %v54
    // Predicated region
    $region22: #{tpu_custom_call.1} parent=1 // pred_check
      %p57 = pneg %p29
    $region23: #{tpu_custom_call.1} parent=1 // pred_check_branch
      %59 = sbr.rel (%p57) target = $region25
    $region24: #{tpu_custom_call.1} parent=1 // pred_region
      %v60 = vld [vmem:[#allocation2] sm:$0xff]
      %v61 = vld [vmem:[#allocation2 + $0x8] sm:$0xff]
      %v62 = vadd.f32 %v60, %v61
      %63 = vadd.xlane.f32.xlu0 %v62
      %v64 = vpop.xlane.xlu0 %63
      %v65 = vrot.slane %v64, 4
      %v66 = vadd.f32 %v64, %v65
      %v67 = vrot.slane %v66, 2
      %v68 = vadd.f32 %v66, %v67
      %v69 = vrot.slane %v68, 1
      %v70 = vadd.f32 %v68, %v69
      %s71 = vtos %v70
      %v72 = vld [vmem:[#allocation3] sm:$0xff]
      %v73 = vld [vmem:[#allocation3 + $0x8] sm:$0xff]
      %v74 = vadd.f32 %v72, %v73
      %75 = vadd.xlane.f32.xlu0 %v74
      %v76 = vpop.xlane.xlu0 %75
      %v77 = vrot.slane %v76, 4
      %v78 = vadd.f32 %v76, %v77
      %v79 = vrot.slane %v78, 2
      %v80 = vadd.f32 %v78, %v79
      %v81 = vrot.slane %v80, 1
      %v82 = vadd.f32 %v80, %v81
      %s83 = vtos %v82
      %v84 = vrcp.pop 2048.0
      %s85 = vtos %v84
      %s86 = smul.f32 %s71, %s85
      %s87 = smul.f32 %s86, 2048.0
      %s88 = smul.f32 %s87, %s86
      %s89 = ssub.f32 %s83, %s88
      %v90 = vrcp.pop 2047.0
      %s91 = vtos %v90
      %s92 = smul.f32 %s89, %s91
      %s93 = smax.f32 %s92, 0.0
      %s94 = sadd.f32 %s93, 1e-10
      %v95 = vstv %s94
      %v96 = vrsqrt.pop %v95
      %s97 = vtos %v96
      %s98 = sld [smem:[#allocation4]]
      %s99 = smul.f32 %s98, %s97
      %s100 = sld [smem:[#allocation5]]
      %s101 = smul.f32 %s86, %s99
      %s102 = ssub.f32 %s100, %s101
      %s103 = scalar_lea.smem [#allocation9], 0
      %104 = sst [smem:[%s103]] %s99
      %s105 = scalar_lea.smem [#allocation9], 1
      %106 = sst [smem:[%s105]] %s102
    $region25: #{tpu_custom_call.1} parent=1 // pred_fallthru
      _
    // Predicated region
    $region26: #{tpu_custom_call.1} parent=1 // pred_check
      _
    $region27: #{tpu_custom_call.1} parent=1 // pred_check_branch
      %108 = sbr.rel (0) target = $region29
    $region28: #{tpu_custom_call.1} parent=1 // pred_region
      %s110 = ssub.s32 16, 16
      %111 = vsyncadd [#allocation8], %s110
      %114 = dma.smem_to_hbm [#allocation9], 16, %s3, [#allocation8]
    $region29: #{tpu_custom_call.1} parent=1 // pred_fallthru
      _
    // Predicated region
    $region30: #{tpu_custom_call.1} parent=1 // pred_check
      _
    $region31: #{tpu_custom_call.1} parent=1 // pred_check_branch
      %116 = sbr.rel (0) target = $region33
    $region32: #{tpu_custom_call.1} parent=1 // pred_region
      %117 = dma.done [#allocation8], 16
    $region33: #{tpu_custom_call.1} parent=1 // pred_fallthru
      _
    %118 = sfence
    %119 = vsyncpa [#allocation7], 1
    %120 = vsyncpa [#allocation8], 1

</llo_original>
